<compile_context>
chip_gen: v7x
topology: tpu7x:2x2x1
jax: 0.10.0
libtpu: 0.0.40
codegen_flags: <defaults>
</compile_context>

<pallas_src>
import functools

import jax
import jax.numpy as jnp
from jax.experimental import pallas as pl
from jax.experimental.pallas import tpu as pltpu


def _recon_loss_kernel(x_ref, img_ref, mask_ref, out_ref, acc_ref, *, num_classes):
    # x_ref    : (1, C, TS)
    # img_ref  : (1, K, C, TS)
    # mask_ref : (1, K, TS)
    # out_ref  : (1, 1, 1)   partial SSE for this (batch, spatial-outer) pair
    # acc_ref  : (C, TS)     persistent vector accumulator
    i = pl.program_id(2)

    @pl.when(i == 0)
    def _():
        acc_ref[...] = jnp.zeros_like(acc_ref)

    # Softmax over the class axis K.  K lives on sublanes, S on lanes; the
    # max / sum reductions over axis 0 are sublane reductions (XLU slot),
    # leaving the VALU slot for the multiply-adds below.
    mask = mask_ref[0].astype(jnp.float32)                       # (K, TS)
    m_max = jnp.max(mask, axis=0, keepdims=True)                 # (1, TS)
    exps = jnp.exp(mask - m_max)                                 # (K, TS), EUP
    denom = jnp.sum(exps, axis=0, keepdims=True)                 # (1, TS)
    inv = pl.reciprocal(denom, approx=False)                     # exact

    # num[c, s] = sum_k exps[k, s] * img[k, c, s]; reciprocal applied once at
    # the end (one multiply instead of K).  K is small and static -> unroll.
    num = exps[0:1, :] * img_ref[0, 0].astype(jnp.float32)       # (C, TS)
    for k in range(1, num_classes):
        num = num + exps[k:k + 1, :] * img_ref[0, k].astype(jnp.float32)

    diff = num * inv - x_ref[0].astype(jnp.float32)              # (C, TS)
    acc_ref[...] = acc_ref[...] + diff * diff                    # elementwise

    # Cross-lane reduction to a scalar only once, at the last inner step.
    @pl.when(i == pl.num_programs(2) - 1)
    def _():
        out_ref[...] = jnp.full((1, 1, 1), jnp.sum(acc_ref[...]),
                                dtype=out_ref.dtype)


def _vmem_capacity_bytes():
    """Physical VMEM per TensorCore; conservative fallback if query fails."""
    try:
        return int(pltpu.get_tpu_info().vmem_capacity_bytes)
    except Exception:
        return 64 << 20  # v7x-sized fallback (safe everywhere)


def _pick_spatial_tile(S, K, C, elem_bytes, vmem_cap):
    """Pick (tile_s, padded_S).

    tile_s is the largest lane-dense (multiple-of-128) spatial tile whose
    double-buffered y_img block stays inside a generation-aware VMEM budget
    (min(8 MiB, vmem_cap/8)); S is padded up to a multiple of tile_s only when
    needed (padded positions contribute exactly 0 to the SSE)."""
    img_block_budget = min(8 << 20, vmem_cap // 8)
    cap_ts = max(128, (img_block_budget // (K * C * elem_bytes)) // 128 * 128)

    if S <= cap_ts:
        # Single full-extent spatial tile per (batch, outer) step -- always a
        # legal block (equals the full dim), no padding needed.
        return S, S

    if S % 128 == 0:
        # Prefer an exact divisor near the cap (no padding, no wasted DMA).
        t = cap_ts
        while t >= max(128, cap_ts // 2):
            if S % t == 0:
                return t, S
            t -= 128

    ts = cap_ts
    s_pad = ((S + ts - 1) // ts) * ts
    return ts, s_pad


def _recon_sse(x_bcs, img_bkcs, mask_bks, *, tile_s, n_outer, n_inner):
    """x: [B,C,Sp], y_img: [B,K,C,Sp], y_mask: [B,K,Sp] -> SSE [B, n_outer, 1]."""
    B, C, _ = x_bcs.shape
    _, K, _, _ = img_bkcs.shape
    elem_bytes = jnp.dtype(x_bcs.dtype).itemsize
    grid = (B, n_outer, n_inner)

    def sidx(o, i):
        return o * n_inner + i

    kernel = functools.partial(_recon_loss_kernel, num_classes=K)

    # Scoped-VMEM limit covering double-buffered inputs + the accumulator,
    # with margin; clamped to physical VMEM.
    img_blk = K * C * tile_s * elem_bytes
    x_blk = C * tile_s * elem_bytes
    mask_blk = K * tile_s * elem_bytes
    acc_blk = C * tile_s * 4
    need = 2 * (img_blk + x_blk + mask_blk) + acc_blk
    vmem_cap = _vmem_capacity_bytes()
    vmem_limit = min(vmem_cap, max(int(need * 1.25) + (2 << 20), 32 << 20))

    return pl.pallas_call(
        kernel,
        out_shape=jax.ShapeDtypeStruct((B, n_outer, 1), jnp.float32),
        grid_spec=pltpu.PrefetchScalarGridSpec(
            num_scalar_prefetch=0,
            grid=grid,
            in_specs=[
                pl.BlockSpec((1, C, tile_s), lambda b, o, i: (b, 0, sidx(o, i))),
                pl.BlockSpec((1, K, C, tile_s),
                             lambda b, o, i: (b, 0, 0, sidx(o, i))),
                pl.BlockSpec((1, K, tile_s), lambda b, o, i: (b, 0, sidx(o, i))),
            ],
            out_specs=pl.BlockSpec((1, 1, 1), lambda b, o, i: (b, o, 0)),
            scratch_shapes=[pltpu.VMEM((C, tile_s), jnp.float32)],
        ),
        compiler_params=pltpu.CompilerParams(
            # Batch and spatial-outer axes are parallel (feed both TCs on v7x
            # even when B == 1); spatial-inner is the sequential reduction
            # over the persistent accumulator.
            dimension_semantics=("parallel", "parallel", "arbitrary"),
            vmem_limit_bytes=vmem_limit,
        ),
    )(x_bcs, img_bkcs, mask_bks)


def recon_loss(x, y_img, y_mask, L=1, *, tile_s=None):
    """Pallas implementation of ReconLoss.forward with PyTorch NCHW inputs."""
    B, C, H, W = x.shape
    _, K, _, _, _ = y_img.shape
    S = H * W
    elem_bytes = jnp.dtype(x.dtype).itemsize

    # NCHW consumed natively; these reshapes are free (contiguous views).
    x_bcs = x.reshape(B, C, S)
    img_bkcs = y_img.reshape(B, K, C, S)
    mask_bks = y_mask.reshape(B, K, S)

    if tile_s is None:
        ts, s_pad = _pick_spatial_tile(S, K, C, elem_bytes, _vmem_capacity_bytes())
    else:
        ts = tile_s
        s_pad = ((S + ts - 1) // ts) * ts

    if s_pad != S:
        pad = s_pad - S
        # Mask padded with 0 (finite -> softmax finite); x / y_img padded with
        # 0 -> padded positions contribute exactly 0 to the SSE.
        x_bcs = jnp.pad(x_bcs, ((0, 0), (0, 0), (0, pad)))
        img_bkcs = jnp.pad(img_bkcs, ((0, 0), (0, 0), (0, 0), (0, pad)))
        mask_bks = jnp.pad(mask_bks, ((0, 0), (0, 0), (0, pad)))

    n_tiles = s_pad // ts
    # Split the spatial axis across the megacore only when the batch axis
    # alone cannot feed two TensorCores.
    n_outer = 2 if (B < 2 and n_tiles >= 2 and n_tiles % 2 == 0) else 1
    n_inner = n_tiles // n_outer

    sse = _recon_sse(x_bcs, img_bkcs, mask_bks,
                     tile_s=ts, n_outer=n_outer, n_inner=n_inner)  # (B, n_outer, 1)
    loss = jnp.sum(sse) / jnp.float32(B * C * S)   # divide by TRUE element count

    # The PyTorch loop sums L identical (deterministic) MSE terms, then
    # divides by L -- mathematically a single term, so one kernel pass.
    del L
    return loss


def _reference(x, y_img, y_mask, L=1):
    """Pure-JAX reference mirroring the PyTorch module."""
    sm = jax.nn.softmax(y_mask[:, :, None, :, :], axis=1)     # [B,K,1,H,W]
    x_hat = jnp.sum(sm * y_img, axis=1)                       # [B,C,H,W]
    mse = jnp.mean((x_hat - x) ** 2)
    return sum(mse for _ in range(L)) / L


if __name__ == "__main__":
    key = jax.random.PRNGKey(0)
    B, C, K, H, W = 2, 4, 3, 16, 16
    k1, k2, k3, k4, k5, k6 = jax.random.split(key, 6)

    # Case 1: basic shapes, auto tile (single spatial tile per batch).
    x = jax.random.normal(k1, (B, C, H, W), dtype=jnp.float32)
    y_img = jax.random.normal(k2, (B, K, C, H, W), dtype=jnp.float32)
    y_mask = jax.random.normal(k3, (B, K, H, W), dtype=jnp.float32)
    loss = jax.block_until_ready(recon_loss(x, y_img, y_mask, L=1))
    ref = _reference(x, y_img, y_mask, L=1)
    assert jnp.allclose(loss, ref, rtol=1e-5, atol=1e-5), (loss, ref)

    # Case 2: non-128-divisible spatial extent (S = 18*18 = 324) with a forced
    # 128-lane tile -> exercises zero-padding + multi-tile accumulation.
    H2 = W2 = 18
    x2 = jax.random.normal(k4, (B, C, H2, W2), dtype=jnp.float32)
    y_img2 = jax.random.normal(k5, (B, K, C, H2, W2), dtype=jnp.float32)
    y_mask2 = jax.random.normal(k6, (B, K, H2, W2), dtype=jnp.float32)
    loss2 = jax.block_until_ready(recon_loss(x2, y_img2, y_mask2, L=1, tile_s=128))
    ref2 = _reference(x2, y_img2, y_mask2, L=1)
    assert jnp.allclose(loss2, ref2, rtol=1e-5, atol=1e-5), (loss2, ref2)

    # Case 3: B = 1 -> the spatial-outer axis becomes the second parallel dim
    # (dual-TC split on v7x), partial SSEs summed in the wrapper.
    loss3 = jax.block_until_ready(
        recon_loss(x[:1], y_img[:1], y_mask[:1], L=1, tile_s=128))
    ref3 = _reference(x[:1], y_img[:1], y_mask[:1], L=1)
    assert jnp.allclose(loss3, ref3, rtol=1e-5, atol=1e-5), (loss3, ref3)

    print("KERNEL_OK")
</pallas_src>

<mosaic_0001>
module attributes {stable_mosaic.version = 11 : i64} {
  func.func @_recon_loss_kernel(%arg0: i32, %arg1: i32, %arg2: i32, %arg3: memref<1x4x256xf32, #tpu.memory_space<vmem>>, %arg4: memref<1x3x4x256xf32, #tpu.memory_space<vmem>>, %arg5: memref<1x3x256xf32, #tpu.memory_space<vmem>>, %arg6: memref<1x1x1xf32, #tpu.memory_space<vmem>>, %arg7: memref<4x256xf32, #tpu.memory_space<vmem>>) attributes {dimension_semantics = [#tpu.dimension_semantics<parallel>, #tpu.dimension_semantics<parallel>, #tpu.dimension_semantics<arbitrary>], iteration_bounds = array<i64: 2, 1, 1>, scalar_prefetch = 0 : i64, scratch_operands = 1 : i64, tpu.core_type = #tpu.core_type<tc>, window_params = [{transform_indices = @transform_0, window_bounds = array<i64: 1, 4, 256>}, {transform_indices = @transform_1, window_bounds = array<i64: 1, 3, 4, 256>}, {transform_indices = @transform_2, window_bounds = array<i64: 1, 3, 256>}, {transform_indices = @transform_3, window_bounds = array<i64: 1, 1, 1>}]} {
    %c0_i32 = arith.constant 0 : i32
    %0 = arith.cmpi eq, %arg2, %c0_i32 : i32
    %1 = arith.extui %0 : i1 to i32
    %c0_i32_0 = arith.constant 0 : i32
    %2 = arith.cmpi ne, %1, %c0_i32_0 : i32
    scf.if %2 {
      %cst_23 = arith.constant 0.000000e+00 : f32
      %42 = vector.broadcast %cst_23 : f32 to vector<4x256xf32>
      %c0_24 = arith.constant 0 : index
      %c0_25 = arith.constant 0 : index
      %43 = vector.load %arg7[%c0_24, %c0_25] : memref<4x256xf32, #tpu.memory_space<vmem>>, vector<4x256xf32>
      tpu.vector_store %arg7[%c0_24, %c0_25], %42 {strides = array<i32>} : memref<4x256xf32, #tpu.memory_space<vmem>>, vector<4x256xf32>,
    } else {
    }
    %c0 = arith.constant 0 : index
    %c0_1 = arith.constant 0 : index
    %c0_2 = arith.constant 0 : index
    %3 = vector.load %arg5[%c0, %c0_1, %c0_2] : memref<1x3x256xf32, #tpu.memory_space<vmem>>, vector<1x3x256xf32>
    %4 = vector.shape_cast %3 : vector<1x3x256xf32> to vector<3x256xf32>
    %cst = arith.constant dense<0xFF800000> : vector<256xf32>
    %5 = vector.multi_reduction <maximumf>, %4, %cst [0] : vector<3x256xf32> to vector<256xf32>
    %6 = vector.shape_cast %5 : vector<256xf32> to vector<1x256xf32>
    %7 = vector.broadcast %6 : vector<1x256xf32> to vector<3x256xf32>
    %8 = arith.subf %4, %7 : vector<3x256xf32>
    %9 = math.exp %8 : vector<3x256xf32>
    %cst_3 = arith.constant dense<0.000000e+00> : vector<256xf32>
    %10 = vector.multi_reduction <add>, %9, %cst_3 [0] : vector<3x256xf32> to vector<256xf32>
    %11 = vector.shape_cast %10 : vector<256xf32> to vector<1x256xf32>
    %12 = tpu.reciprocal %11 : vector<1x256xf32> -> vector<1x256xf32>
    %13 = vector.extract_strided_slice %9 {offsets = [0, 0], sizes = [1, 256], strides = [1, 1]} : vector<3x256xf32> to vector<1x256xf32>
    %c0_4 = arith.constant 0 : index
    %c0_5 = arith.constant 0 : index
    %c0_6 = arith.constant 0 : index
    %c0_7 = arith.constant 0 : index
    %14 = vector.load %arg4[%c0_4, %c0_5, %c0_6, %c0_7] : memref<1x3x4x256xf32, #tpu.memory_space<vmem>>, vector<1x1x4x256xf32>
    %15 = vector.shape_cast %14 : vector<1x1x4x256xf32> to vector<4x256xf32>
    %16 = vector.broadcast %13 : vector<1x256xf32> to vector<4x256xf32>
    %17 = arith.mulf %16, %15 : vector<4x256xf32>
    %18 = vector.extract_strided_slice %9 {offsets = [1, 0], sizes = [1, 256], strides = [1, 1]} : vector<3x256xf32> to vector<1x256xf32>
    %c0_8 = arith.constant 0 : index
    %c1 = arith.constant 1 : index
    %c0_9 = arith.constant 0 : index
    %c0_10 = arith.constant 0 : index
    %19 = vector.load %arg4[%c0_8, %c1, %c0_9, %c0_10] : memref<1x3x4x256xf32, #tpu.memory_space<vmem>>, vector<1x1x4x256xf32>
    %20 = vector.shape_cast %19 : vector<1x1x4x256xf32> to vector<4x256xf32>
    %21 = vector.broadcast %18 : vector<1x256xf32> to vector<4x256xf32>
    %22 = arith.mulf %21, %20 : vector<4x256xf32>
    %23 = arith.addf %17, %22 : vector<4x256xf32>
    %24 = vector.extract_strided_slice %9 {offsets = [2, 0], sizes = [1, 256], strides = [1, 1]} : vector<3x256xf32> to vector<1x256xf32>
    %c0_11 = arith.constant 0 : index
    %c2 = arith.constant 2 : index
    %c0_12 = arith.constant 0 : index
    %c0_13 = arith.constant 0 : index
    %25 = vector.load %arg4[%c0_11, %c2, %c0_12, %c0_13] : memref<1x3x4x256xf32, #tpu.memory_space<vmem>>, vector<1x1x4x256xf32>
    %26 = vector.shape_cast %25 : vector<1x1x4x256xf32> to vector<4x256xf32>
    %27 = vector.broadcast %24 : vector<1x256xf32> to vector<4x256xf32>
    %28 = arith.mulf %27, %26 : vector<4x256xf32>
    %29 = arith.addf %23, %28 : vector<4x256xf32>
    %30 = vector.broadcast %12 : vector<1x256xf32> to vector<4x256xf32>
    %31 = arith.mulf %29, %30 : vector<4x256xf32>
    %c0_14 = arith.constant 0 : index
    %c0_15 = arith.constant 0 : index
    %c0_16 = arith.constant 0 : index
    %32 = vector.load %arg3[%c0_14, %c0_15, %c0_16] : memref<1x4x256xf32, #tpu.memory_space<vmem>>, vector<1x4x256xf32>
    %33 = vector.shape_cast %32 : vector<1x4x256xf32> to vector<4x256xf32>
    %34 = arith.subf %31, %33 : vector<4x256xf32>
    %c0_17 = arith.constant 0 : index
    %c0_18 = arith.constant 0 : index
    %35 = vector.load %arg7[%c0_17, %c0_18] : memref<4x256xf32, #tpu.memory_space<vmem>>, vector<4x256xf32>
    %36 = arith.mulf %34, %34 : vector<4x256xf32>
    %37 = arith.addf %35, %36 : vector<4x256xf32>
    %c0_19 = arith.constant 0 : index
    %c0_20 = arith.constant 0 : index
    %38 = vector.load %arg7[%c0_19, %c0_20] : memref<4x256xf32, #tpu.memory_space<vmem>>, vector<4x256xf32>
    tpu.vector_store %arg7[%c0_19, %c0_20], %37 {strides = array<i32>} : memref<4x256xf32, #tpu.memory_space<vmem>>, vector<4x256xf32>,
    %c0_i32_21 = arith.constant 0 : i32
    %39 = arith.cmpi eq, %arg2, %c0_i32_21 : i32
    %40 = arith.extui %39 : i1 to i32
    %c0_i32_22 = arith.constant 0 : i32
    %41 = arith.cmpi ne, %40, %c0_i32_22 : i32
    scf.if %41 {
      %c0_23 = arith.constant 0 : index
      %c0_24 = arith.constant 0 : index
      %42 = vector.load %arg7[%c0_23, %c0_24] : memref<4x256xf32, #tpu.memory_space<vmem>>, vector<4x256xf32>
      %43 = vector.shape_cast %42 : vector<4x256xf32> to vector<1x4x256xf32>
      %cst_25 = arith.constant dense<0.000000e+00> : vector<1xf32>
      %44 = vector.multi_reduction <add>, %43, %cst_25 [1, 2] : vector<1x4x256xf32> to vector<1xf32>
      %45 = vector.shape_cast %44 : vector<1xf32> to vector<1x1x1xf32>
      %46 = vector.extract %45[0, 0, 0] : f32 from vector<1x1x1xf32>
      %47 = vector.broadcast %46 : f32 to vector<1x1x1xf32>
      %c0_26 = arith.constant 0 : index
      %c0_27 = arith.constant 0 : index
      %c0_28 = arith.constant 0 : index
      %48 = vector.load %arg6[%c0_26, %c0_27, %c0_28] : memref<1x1x1xf32, #tpu.memory_space<vmem>>, vector<1x1x1xf32>
      tpu.vector_store %arg6[%c0_26, %c0_27, %c0_28], %47 {strides = array<i32>} : memref<1x1x1xf32, #tpu.memory_space<vmem>>, vector<1x1x1xf32>,
    } else {
    }
    return
  }
  func.func @transform_0(%arg0: i32, %arg1: i32, %arg2: i32) -> (i32, i32, i32) {
    %c1_i32 = arith.constant 1 : i32
    %0 = arith.muli %arg1, %c1_i32 : i32
    %1 = arith.addi %0, %arg2 : i32
    %c0_i32 = arith.constant 0 : i32
    %c0_i32_0 = arith.constant 0 : i32
    return %arg0, %c0_i32, %1 : i32, i32, i32
  }
  func.func @transform_1(%arg0: i32, %arg1: i32, %arg2: i32) -> (i32, i32, i32, i32) {
    %c1_i32 = arith.constant 1 : i32
    %0 = arith.muli %arg1, %c1_i32 : i32
    %1 = arith.addi %0, %arg2 : i32
    %c0_i32 = arith.constant 0 : i32
    %c0_i32_0 = arith.constant 0 : i32
    %c0_i32_1 = arith.constant 0 : i32
    return %arg0, %c0_i32, %c0_i32_0, %1 : i32, i32, i32, i32
  }
  func.func @transform_2(%arg0: i32, %arg1: i32, %arg2: i32) -> (i32, i32, i32) {
    %c1_i32 = arith.constant 1 : i32
    %0 = arith.muli %arg1, %c1_i32 : i32
    %1 = arith.addi %0, %arg2 : i32
    %c0_i32 = arith.constant 0 : i32
    %c0_i32_0 = arith.constant 0 : i32
    return %arg0, %c0_i32, %1 : i32, i32, i32
  }
  func.func @transform_3(%arg0: i32, %arg1: i32, %arg2: i32) -> (i32, i32, i32) {
    %c0_i32 = arith.constant 0 : i32
    %c0_i32_0 = arith.constant 0 : i32
    return %arg0, %arg1, %c0_i32 : i32, i32, i32
  }
}

</mosaic_0001>

<llo_original>
// kernel: tpu_custom_call.1
$region0: #{tpu_custom_call.1}
  #allocation0 [shape = 'u32[]', space=smem, size = 0x4, offset = 0x4, fixed_abs, tag = 'smem constant byte address 0x4 - core index']
  #allocation1 [shape = 'u32[144,128]{1,0:T(1,128)}', space=vmem, size = 0x12000, scoped, tag = 'internal scratch']
  #allocation2 [shape = 'f32[4,256]{1,0:T(4,128)}', space=vmem, size = 0x1000, scoped, tag = 'scratch operand']
  %s0 = inlined_call_operand.vmem [shape: f32[2,4,256], index: 0, kind: input, shape index: {}]
  %s1 = inlined_call_operand.hbm [shape: f32[2,3,4,256], index: 1, kind: input, shape index: {}]
  %s2 = inlined_call_operand.vmem [shape: f32[2,3,256], index: 2, kind: input, shape index: {}]
  %s3 = inlined_call_operand.vmem [shape: f32[2,1,1], index: 3, kind: output, shape index: {}]
  %s4 = sld [smem:[#allocation0]]
  $region57: #{tpu_custom_call.1} parent=0
    _
  %s6 = ssub.s32 1, %s4
  %s7 = scalar_select 0, %s6, %s4
  $region1: #{tpu_custom_call.1} parent=0
    #allocation3 [shape = 'u8[24576]{0}', space=vmem, size = 0x6000, scoped, tag = 'input window, operand 1']
    #allocation4 [shape = 's32[2]{0}', space=sflag, size = 0x8, scoped, tag = 'scoped memory for tpu_custom_call.1']
    %8 = vsyncpa [#allocation4], 0
    %s9 = scalar_lea.sflag [#allocation4], 1
    %10 = vsyncpa %s9, 0
    loop: start=0, step=1, limit=4
    $region2: #{tpu_custom_call.1} parent=1 // loop_pre_header
      _
    $region3: #{tpu_custom_call.1} parent=1 // loop_header
      %s12 = sphi 0, %s16
      %p13 = scmp.ge.s32.totalorder %s12, 4
      %s19 = sphi 0, %s38
      %s20 = sphi 0, %s34
      %s21 = sphi 0, %s30
      %s22 = sphi 0, %s19
      %s23 = sphi 0, %s20
      %s24 = sphi 0, %s21
      %s25 = sphi 0, %s22
      %s26 = sphi 0, %s23
      %s27 = sphi 0, %s24
      %s45 = sphi 0, %s47
      %s48 = sphi 0, %s45
      %s49 = sphi 0, %s48
      %s65 = sphi 0, %s49
      %s75 = sphi 0, %s77
      %s78 = sphi 0, %s75
      %s79 = sphi 0, %s78
      %s95 = sphi 0, %s79
      %s105 = sphi 0, %s107
      %s108 = sphi 0, %s105
      %s109 = sphi 0, %s108
      %s125 = sphi 0, %s109
      %s133 = sphi 0, %s135
      %s136 = sphi 0, %s133
      %s137 = sphi 0, %s136
      %s153 = sphi 0, %s137
    $region4: #{tpu_custom_call.1} parent=1 // loop_header_branch
      %15 = sbr.rel (%p13) target = $region8
    $region5: #{tpu_custom_call.1} parent=1 // loop_body
      %s17 = ssub.s32 %s12, 1
      %s18 = ssub.s32 %s12, 2
      %s28 = sadd.s32 1, %s21
      %p29 = scmp.ge.s32.totalorder %s28, 1
      %s30 = scalar_select %p29, 0, %s28
      %s31 = sadd.s32 1, %s20
      %s32 = scalar_select %p29, %s31, %s20
      %p33 = scmp.ge.s32.totalorder %s32, 1
      %s34 = scalar_select %p33, 0, %s32
      %s35 = sadd.s32 1, %s19
      %s36 = scalar_select %p33, %s35, %s19
      %p37 = scmp.ge.s32.totalorder %s36, 2
      %s38 = scalar_select %p37, 0, %s36
      %s39 = sadd.s32 %s20, %s21
      %s40 = sadd.s32 %s34, %s30
      %s41 = ssub.s32 %s19, %s38
      %s42 = ssub.s32 %s39, %s40
      %s43 = sor.u32 %s41, %s42
      %p44 = scmp.eq.s32.totalorder %s43, 0
      %s46 = sadd.s32 %s45, 1
      %s47 = scalar_select %p44, %s45, %s46
      %p50 = pneg %p44
      %p51 = scmp.eq.s32.totalorder %s12, 1
      %p52 = por %p50, %p51
      %p53 = scmp.ne.s32.totalorder %s45, %s48
      %p54 = scmp.eq.s32.totalorder %s12, 0
      %p55 = por %p53, %p54
      %p56 = scmp.ne.s32.totalorder %s45, %s48
      %p57 = scmp.eq.s32.totalorder %s17, 1
      %p58 = por %p56, %p57
      %p59 = scmp.ne.s32.totalorder %s48, %s49
      %p60 = scmp.eq.s32.totalorder %s17, 0
      %p61 = por %p59, %p60
      %p62 = scmp.ne.s32.totalorder %s48, %s49
      %p63 = scmp.eq.s32.totalorder %s18, 1
      %p64 = por %p62, %p63
      %p66 = scmp.ne.s32.totalorder %s49, %s65
      %p67 = scmp.eq.s32.totalorder %s18, 0
      %p68 = por %p66, %p67
      %s69 = sadd.s32 %s20, %s21
      %s70 = sadd.s32 %s34, %s30
      %s71 = ssub.s32 %s19, %s38
      %s72 = ssub.s32 %s69, %s70
      %s73 = sor.u32 %s71, %s72
      %p74 = scmp.eq.s32.totalorder %s73, 0
      %s76 = sadd.s32 %s75, 1
      %s77 = scalar_select %p74, %s75, %s76
      %p80 = pneg %p74
      %p81 = scmp.eq.s32.totalorder %s12, 1
      %p82 = por %p80, %p81
      %p83 = scmp.ne.s32.totalorder %s75, %s78
      %p84 = scmp.eq.s32.totalorder %s12, 0
      %p85 = por %p83, %p84
      %p86 = scmp.ne.s32.totalorder %s75, %s78
      %p87 = scmp.eq.s32.totalorder %s17, 1
      %p88 = por %p86, %p87
      %p89 = scmp.ne.s32.totalorder %s78, %s79
      %p90 = scmp.eq.s32.totalorder %s17, 0
      %p91 = por %p89, %p90
      %p92 = scmp.ne.s32.totalorder %s78, %s79
      %p93 = scmp.eq.s32.totalorder %s18, 1
      %p94 = por %p92, %p93
      %p96 = scmp.ne.s32.totalorder %s79, %s95
      %p97 = scmp.eq.s32.totalorder %s18, 0
      %p98 = por %p96, %p97
      %s99 = sadd.s32 %s20, %s21
      %s100 = sadd.s32 %s34, %s30
      %s101 = ssub.s32 %s19, %s38
      %s102 = ssub.s32 %s99, %s100
      %s103 = sor.u32 %s101, %s102
      %p104 = scmp.eq.s32.totalorder %s103, 0
      %s106 = sadd.s32 %s105, 1
      %s107 = scalar_select %p104, %s105, %s106
      %p110 = pneg %p104
      %p111 = scmp.eq.s32.totalorder %s12, 1
      %p112 = por %p110, %p111
      %p113 = scmp.ne.s32.totalorder %s105, %s108
      %p114 = scmp.eq.s32.totalorder %s12, 0
      %p115 = por %p113, %p114
      %p116 = scmp.ne.s32.totalorder %s105, %s108
      %p117 = scmp.eq.s32.totalorder %s17, 1
      %p118 = por %p116, %p117
      %p119 = scmp.ne.s32.totalorder %s108, %s109
      %p120 = scmp.eq.s32.totalorder %s17, 0
      %p121 = por %p119, %p120
      %p122 = scmp.ne.s32.totalorder %s108, %s109
      %p123 = scmp.eq.s32.totalorder %s18, 1
      %p124 = por %p122, %p123
      %p126 = scmp.ne.s32.totalorder %s109, %s125
      %p127 = scmp.eq.s32.totalorder %s18, 0
      %p128 = por %p126, %p127
      %s129 = ssub.s32 %s19, %s38
      %s130 = ssub.s32 %s20, %s34
      %s131 = sor.u32 %s129, %s130
      %p132 = scmp.eq.s32.totalorder %s131, 0
      %s134 = sadd.s32 %s133, 1
      %s135 = scalar_select %p132, %s133, %s134
      %p138 = pneg %p132
      %p139 = scmp.eq.s32.totalorder %s12, 1
      %p140 = por %p138, %p139
      %p141 = scmp.ne.s32.totalorder %s133, %s136
      %p142 = scmp.eq.s32.totalorder %s12, 0
      %p143 = por %p141, %p142
      %p144 = scmp.ne.s32.totalorder %s133, %s136
      %p145 = scmp.eq.s32.totalorder %s17, 1
      %p146 = por %p144, %p145
      %p147 = scmp.ne.s32.totalorder %s136, %s137
      %p148 = scmp.eq.s32.totalorder %s17, 0
      %p149 = por %p147, %p148
      %p150 = scmp.ne.s32.totalorder %s136, %s137
      %p151 = scmp.eq.s32.totalorder %s18, 1
      %p152 = por %p150, %p151
      %p154 = scmp.ne.s32.totalorder %s137, %s153
      %p155 = scmp.eq.s32.totalorder %s18, 0
      %p156 = por %p154, %p155
      %p157 = scmp.le.s32.totalorder 1, %s12
      %p158 = scmp.lt.s32.totalorder %s12, 3
      %p159 = pnand %p157, %p158
      %p160 = pneg %p159
      // Predicated region
      $region9: #{tpu_custom_call.1} parent=5 // pred_check
        _
      $region10: #{tpu_custom_call.1} parent=5 // pred_check_branch
        %162 = sbr.rel (%p159) target = $region12
      $region11: #{tpu_custom_call.1} parent=5 // pred_region
        %s163 = ssub.s32 %s12, 1
      $region12: #{tpu_custom_call.1} parent=5 // pred_fallthru
        _
      %p164 = scmp.lt.s32.totalorder %s12, 2
      // Predicated region
      $region13: #{tpu_custom_call.1} parent=5 // pred_check
        %p165 = pneg %p164
      $region14: #{tpu_custom_call.1} parent=5 // pred_check_branch
        %167 = sbr.rel (%p165) target = $region16
      $region15: #{tpu_custom_call.1} parent=5 // pred_region
        // Predicated region
        $region17: #{tpu_custom_call.1} parent=15 // pred_check
          %p168 = pneg %p55
        $region18: #{tpu_custom_call.1} parent=15 // pred_check_branch
          %170 = sbr.rel (%p168) target = $region20
        $region19: #{tpu_custom_call.1} parent=15 // pred_region
          %s171 = sadd.s32 %s20, %s21
          %s172 = smul.u32 2, %s171
          %p173 = scmp.lt.s32.totalorder %s19, 1
          %s174 = scalar_select %p173, %s19, 1
          %p175 = scmp.lt.s32.totalorder %s172, 1
          %s176 = scalar_select %p175, %s172, 1
          %s177 = smul.addr %s174, 2
          %s178 = sadd.s32 %s176, %s177
          %s179 = smul.addr %s178, 4
          %s180 = scalar_lea.vmem %s0, %s179
          %s181 = sadd.s32 %s20, %s21
          %s182 = smul.u32 2, %s181
        $region20: #{tpu_custom_call.1} parent=15 // pred_fallthru
          _
        // Predicated region
        $region21: #{tpu_custom_call.1} parent=15 // pred_check
          %p183 = pneg %p85
        $region22: #{tpu_custom_call.1} parent=15 // pred_check_branch
          %185 = sbr.rel (%p183) target = $region24
        $region23: #{tpu_custom_call.1} parent=15 // pred_region
          %s186 = sand.u32 %s75, 1
          %s187 = scalar_lea.sflag [#allocation4], %s186
          %s188 = sand.u32 %s75, 1
          %s189 = smul.addr %s188, 24
          %s190 = scalar_lea.vmem [#allocation3], %s189
          %s191 = sadd.s32 %s20, %s21
          %s192 = smul.u32 2, %s191
          %s194 = ssub.s32 384, 384
          %195 = vsyncadd %s187, %s194
          %s196 = smul.addr %s19, 6
          %s197 = sadd.s32 %s192, %s196
          %s198 = smul.addr %s197, 64
          %s199 = scalar_lea.hbm %s1, %s198
          %s200 = sshll.u32 %s190, 4
          %s201 = int_to_ptr.vmem [resolvable:$true] %s200
          %206 = dma.hbm_to_vmem [thread:$0]  %s199, 384, %s201, %s187, 128, 128, 8
        $region24: #{tpu_custom_call.1} parent=15 // pred_fallthru
          _
        // Predicated region
        $region25: #{tpu_custom_call.1} parent=15 // pred_check
          %p207 = pneg %p115
        $region26: #{tpu_custom_call.1} parent=15 // pred_check_branch
          %209 = sbr.rel (%p207) target = $region28
        $region27: #{tpu_custom_call.1} parent=15 // pred_region
          %s210 = sadd.s32 %s20, %s21
          %s211 = smul.u32 2, %s210
          %p212 = scmp.lt.s32.totalorder %s19, 1
          %s213 = scalar_select %p212, %s19, 1
          %p214 = scmp.lt.s32.totalorder %s211, 1
          %s215 = scalar_select %p214, %s211, 1
          %s216 = smul.addr %s213, 2
          %s217 = sadd.s32 %s215, %s216
          %s218 = smul.addr %s217, 4
          %s219 = scalar_lea.vmem %s2, %s218
          %s220 = sadd.s32 %s20, %s21
          %s221 = smul.u32 2, %s220
        $region28: #{tpu_custom_call.1} parent=15 // pred_fallthru
          _
      $region16: #{tpu_custom_call.1} parent=5 // pred_fallthru
        _
      %p222 = scmp.le.s32.totalorder 1, %s12
      %p223 = scmp.lt.s32.totalorder %s12, 3
      %p224 = pnand %p222, %p223
      %p225 = pneg %p224
      // Predicated region
      $region29: #{tpu_custom_call.1} parent=5 // pred_check
        _
      $region30: #{tpu_custom_call.1} parent=5 // pred_check_branch
        %227 = sbr.rel (%p224) target = $region32
      $region31: #{tpu_custom_call.1} parent=5 // pred_region
        %s228 = ssub.s32 %s12, 1
        %s229 = sand.u32 %s78, 1
        %s230 = scalar_lea.sflag [#allocation4], %s229
        %s231 = sand.u32 %s78, 1
        %s232 = smul.addr %s231, 24
        %s233 = scalar_lea.vmem [#allocation3], %s232
        // Predicated region
        $region33: #{tpu_custom_call.1} parent=31 // pred_check
          %p234 = pneg %p91
        $region34: #{tpu_custom_call.1} parent=31 // pred_check_branch
          %236 = sbr.rel (%p234) target = $region36
        $region35: #{tpu_custom_call.1} parent=31 // pred_region
          %237 = dma.done %s230, 384
        $region36: #{tpu_custom_call.1} parent=31 // pred_fallthru
          _
        %s238 = sadd.s32 %s23, %s24
        %s239 = smul.u32 2, %s238
        %p240 = scmp.lt.s32.totalorder %s22, 1
        %s241 = scalar_select %p240, %s22, 1
        %p242 = scmp.lt.s32.totalorder %s239, 1
        %s243 = scalar_select %p242, %s239, 1
        %s244 = smul.addr %s241, 2
        %s245 = sadd.s32 %s243, %s244
        %s246 = smul.addr %s245, 4
        %s247 = scalar_lea.vmem %s0, %s246
        %p248 = pneg %p61
        %p249 = pneg %p58
        %s250 = sand.u32 %s78, 1
        %s251 = scalar_lea.sflag [#allocation4], %s250
        %s252 = sand.u32 %s78, 1
        %s253 = smul.addr %s252, 24
        %s254 = scalar_lea.vmem [#allocation3], %s253
        %p255 = pneg %p91
        %p256 = pneg %p88
        %s257 = sadd.s32 %s23, %s24
        %s258 = smul.u32 2, %s257
        %p259 = scmp.lt.s32.totalorder %s22, 1
        %s260 = scalar_select %p259, %s22, 1
        %p261 = scmp.lt.s32.totalorder %s258, 1
        %s262 = scalar_select %p261, %s258, 1
        %s263 = smul.addr %s260, 2
        %s264 = sadd.s32 %s262, %s263
        %s265 = smul.addr %s264, 4
        %s266 = scalar_lea.vmem %s2, %s265
        %p267 = pneg %p121
        %p268 = pneg %p118
        %p269 = pneg %p149
        %p270 = pneg %p146
        %p271 = scmp.lt.s32.totalorder %s22, 1
        %s272 = scalar_select %p271, %s22, 1
        %p273 = scmp.lt.s32.totalorder %s23, 0
        %s274 = scalar_select %p273, %s23, 0
        %s275 = sadd.s32 %s274, %s272
        %s276 = scalar_lea.vmem %s3, %s275
        %s277 = sadd.s32 %s23, %s24
        %s278 = smul.u32 2, %s277
        %p279 = scmp.lt.s32.totalorder %s22, 1
        %s280 = scalar_select %p279, %s22, 1
        %p281 = scmp.lt.s32.totalorder %s278, 1
        %s282 = scalar_select %p281, %s278, 1
        %s283 = smul.addr %s280, 2
        %s284 = sadd.s32 %s282, %s283
        %s285 = smul.addr %s284, 4
        %s286 = scalar_lea.vmem %s0, %s285
        %s287 = sadd.s32 %s23, %s24
        %s288 = smul.u32 2, %s287
        %s289 = sadd.s32 %s23, %s24
        %s290 = smul.u32 2, %s289
        %s291 = sadd.s32 %s23, %s24
        %s292 = smul.u32 2, %s291
        %p293 = scmp.lt.s32.totalorder %s22, 1
        %s294 = scalar_select %p293, %s22, 1
        %p295 = scmp.lt.s32.totalorder %s292, 1
        %s296 = scalar_select %p295, %s292, 1
        %s297 = smul.addr %s294, 2
        %s298 = sadd.s32 %s296, %s297
        %s299 = smul.addr %s298, 4
        %s300 = scalar_lea.vmem %s2, %s299
        %s301 = sadd.s32 %s23, %s24
        %s302 = smul.u32 2, %s301
        %p303 = scmp.lt.s32.totalorder %s22, 1
        %s304 = scalar_select %p303, %s22, 1
        %p305 = scmp.lt.s32.totalorder %s23, 0
        %s306 = scalar_select %p305, %s23, 0
        %s307 = sadd.s32 %s306, %s304
        %s308 = scalar_lea.vmem %s3, %s307
        %p309 = scmp.eq.s32.totalorder %s24, 0
        // Predicated region
        $region37: #{tpu_custom_call.1} parent=31 // pred_check
          %p310 = pneg %p309
        $region38: #{tpu_custom_call.1} parent=31 // pred_check_branch
          %312 = sbr.rel (%p310) target = $region40
        $region39: #{tpu_custom_call.1} parent=31 // pred_region
          %313 = vst [vmem:[#allocation2] sm:$0xff] 0.0
        $region40: #{tpu_custom_call.1} parent=31 // pred_fallthru
          _
        %v314 = vld [vmem:[%s300] sm:$0x77]
        %v316 = vcombine.high %v314, %v314
        %vm318 = vcmask 1042432
        %v319 = vsel %vm318, %v314, -inf
        %v320 = vrot.slane %v319, 4
        %v321 = vmax.f32 %v319, %v320
        %v322 = vrot.slane %v321, 2
        %v323 = vmax.f32 %v321, %v322
        %v324 = vrot.slane %v323, 1
        %v325 = vmax.f32 %v323, %v324
        %v326 = vsel %vm318, %v316, -inf
        %v327 = vrot.slane %v326, 4
        %v328 = vmax.f32 %v326, %v327
        %v329 = vrot.slane %v328, 2
        %v330 = vmax.f32 %v328, %v329
        %v331 = vrot.slane %v330, 1
        %v332 = vmax.f32 %v330, %v331
        %v335 = vcombine.low %v325, %v332
        %v337 = vsub.f32 %v314, %v335
        %v338 = vmul.f32 %v337, 1.442695
        %v339 = vpow.pop %v338
        %v341 = vcombine.high %v339, %v339
        %v343 = vsel %vm318, %v339, 0.0
        %v344 = vrot.slane %v343, 4
        %v345 = vadd.f32 %v343, %v344
        %v346 = vrot.slane %v345, 2
        %v347 = vadd.f32 %v345, %v346
        %v348 = vrot.slane %v347, 1
        %v349 = vadd.f32 %v347, %v348
        %v350 = vsel %vm318, %v341, 0.0
        %v351 = vrot.slane %v350, 4
        %v352 = vadd.f32 %v350, %v351
        %v353 = vrot.slane %v352, 2
        %v354 = vadd.f32 %v352, %v353
        %v355 = vrot.slane %v354, 1
        %v356 = vadd.f32 %v354, %v355
        %v357 = vrcp.pop %v349
        %v358 = vrcp.pop %v356
        %v359 = vld [vmem:[%s233] sm:$0xff]
        %v360 = vlaneseq
        %v361 = vshrl.u32 %v360, 7
        %v362 = vsub.s32 0, %v361
        %v363 = vrot.slane %v339, %v362
        %v364 = vlaneseq
        %v365 = vshrl.u32 %v364, 7
        %v366 = vsub.s32 4, %v365
        %v367 = vrot.slane %v339, %v366
        %v370 = vlaneseq
        %v371 = vshrl.u32 %v370, 7
        %v372 = vsub.s32 0, %v371
        %v373 = vrot.slane %v363, %v372
        %v374 = vlaneseq
        %v375 = vshrl.u32 %v374, 7
        %v376 = vsub.s32 0, %v375
        %v377 = vrot.slane %v367, %v376
        %v379 = vcombine.high %v359, %v359
        %v381 = vmul.f32 %v373, %v359
        %v382 = vmul.f32 %v377, %v379
        %s383 = scalar_lea.vmem %s233, 8 [#allocation3]
        %v384 = vld [vmem:[%s383] sm:$0xff]
        %v385 = vlaneseq
        %v386 = vshrl.u32 %v385, 7
        %v387 = vsub.s32 1, %v386
        %v388 = vrot.slane %v339, %v387
        %v389 = vlaneseq
        %v390 = vshrl.u32 %v389, 7
        %v391 = vsub.s32 5, %v390
        %v392 = vrot.slane %v339, %v391
        %v395 = vlaneseq
        %v396 = vshrl.u32 %v395, 7
        %v397 = vsub.s32 1, %v396
        %v398 = vrot.slane %v388, %v397
        %v399 = vlaneseq
        %v400 = vshrl.u32 %v399, 7
        %v401 = vsub.s32 1, %v400
        %v402 = vrot.slane %v392, %v401
        %v404 = vcombine.high %v384, %v384
        %v406 = vmul.f32 %v398, %v384
        %v407 = vmul.f32 %v402, %v404
        %v408 = vadd.f32 %v381, %v406
        %v409 = vadd.f32 %v382, %v407
        %s410 = scalar_lea.vmem %s233, 16 [#allocation3]
        %v411 = vld [vmem:[%s410] sm:$0xff]
        %v412 = vlaneseq
        %v413 = vshrl.u32 %v412, 7
        %v414 = vsub.s32 2, %v413
        %v415 = vrot.slane %v339, %v414
        %v416 = vlaneseq
        %v417 = vshrl.u32 %v416, 7
        %v418 = vsub.s32 6, %v417
        %v419 = vrot.slane %v339, %v418
        %v422 = vlaneseq
        %v423 = vshrl.u32 %v422, 7
        %v424 = vsub.s32 2, %v423
        %v425 = vrot.slane %v415, %v424
        %v426 = vlaneseq
        %v427 = vshrl.u32 %v426, 7
        %v428 = vsub.s32 2, %v427
        %v429 = vrot.slane %v419, %v428
        %v431 = vcombine.high %v411, %v411
        %v433 = vmul.f32 %v425, %v411
        %v434 = vmul.f32 %v429, %v431
        %v435 = vadd.f32 %v408, %v433
        %v436 = vadd.f32 %v409, %v434
        %v437 = vmul.f32 %v435, %v357
        %v438 = vmul.f32 %v436, %v358
        %v439 = vld [vmem:[%s286] sm:$0xff]
        %v441 = vcombine.high %v439, %v439
        %v443 = vsub.f32 %v437, %v439
        %v444 = vsub.f32 %v438, %v441
        %v445 = vld [vmem:[#allocation2] sm:$0xff]
        %v446 = vmul.f32 %v443, %v443
        %v447 = vmul.f32 %v444, %v444
        %v450 = vcombine.low %v446, %v447
        %v452 = vadd.f32 %v445, %v450
        %453 = vst [vmem:[#allocation2] sm:$0xff] %v452
        // Predicated region
        $region41: #{tpu_custom_call.1} parent=31 // pred_check
          %p454 = pneg %p309
        $region42: #{tpu_custom_call.1} parent=31 // pred_check_branch
          %456 = sbr.rel (%p454) target = $region44
        $region43: #{tpu_custom_call.1} parent=31 // pred_region
          %v457 = vld [vmem:[#allocation2] sm:$0xff]
          %v459 = vcombine.high %v457, %v457
          %vm461 = vcmask 1043456
          %v462 = vsel %vm461, %v457, 0.0
          %v463 = vsel %vm461, %v459, 0.0
          %v464 = vadd.f32 %v462, %v463
          %465 = vadd.xlane.f32.xlu0 %v464
          %v466 = vpop.xlane.xlu0 %465
          %v467 = vrot.slane %v466, 4
          %v468 = vadd.f32 %v466, %v467
          %v469 = vrot.slane %v468, 2
          %v470 = vadd.f32 %v468, %v469
          %v471 = vrot.slane %v470, 1
          %v472 = vadd.f32 %v470, %v471
          %s473 = vtos %v472
          %v474 = vstv %s473
          %vm475 = vcmask 0
          %476 = vst.msk [vmem:[%s308] sm:$0x1] %vm475, %v474
        $region44: #{tpu_custom_call.1} parent=31 // pred_fallthru
          _
        %p477 = scmp.lt.s32.totalorder %s22, 1
        %s478 = scalar_select %p477, %s22, 1
        %p479 = scmp.lt.s32.totalorder %s23, 0
        %s480 = scalar_select %p479, %s23, 0
        %s481 = sadd.s32 %s480, %s478
        %s482 = scalar_lea.vmem %s3, %s481
        // Predicated region
        $region45: #{tpu_custom_call.1} parent=31 // pred_check
          %p483 = pneg %p146
        $region46: #{tpu_custom_call.1} parent=31 // pred_check_branch
          %485 = sbr.rel (%p483) target = $region48
        $region47: #{tpu_custom_call.1} parent=31 // pred_region
          _
        $region48: #{tpu_custom_call.1} parent=31 // pred_fallthru
          _
      $region32: #{tpu_custom_call.1} parent=5 // pred_fallthru
        _
      %p486 = scmp.le.s32.totalorder 2, %s12
      // Predicated region
      $region49: #{tpu_custom_call.1} parent=5 // pred_check
        %p487 = pneg %p486
      $region50: #{tpu_custom_call.1} parent=5 // pred_check_branch
        %489 = sbr.rel (%p487) target = $region52
      $region51: #{tpu_custom_call.1} parent=5 // pred_region
        %s490 = ssub.s32 %s12, 2
        // Predicated region
        $region53: #{tpu_custom_call.1} parent=51 // pred_check
          %p491 = pneg %p152
        $region54: #{tpu_custom_call.1} parent=51 // pred_check_branch
          %493 = sbr.rel (%p491) target = $region56
        $region55: #{tpu_custom_call.1} parent=51 // pred_region
          %p494 = scmp.lt.s32.totalorder %s25, 1
          %s495 = scalar_select %p494, %s25, 1
          %p496 = scmp.lt.s32.totalorder %s26, 0
          %s497 = scalar_select %p496, %s26, 0
          %s498 = sadd.s32 %s497, %s495
          %s499 = scalar_lea.vmem %s3, %s498
        $region56: #{tpu_custom_call.1} parent=51 // pred_fallthru
          _
      $region52: #{tpu_custom_call.1} parent=5 // pred_fallthru
        _
    $region6: #{tpu_custom_call.1} parent=1 // loop_footer
      %s16 = sadd.s32 1, %s12
    $region7: #{tpu_custom_call.1} parent=1 // loop_footer_branch
      %11 = sbr.rel target = $region3
    $region8: #{tpu_custom_call.1} parent=1 // loop_exit
      _
    %500 = vsyncpa [#allocation4], 1
    %s501 = scalar_lea.sflag [#allocation4], 1
    %502 = vsyncpa %s501, 1

</llo_original>
